<compile_context>
chip_gen: v7x
topology: tpu7x:2x2x1
jax: 0.10.0
libtpu: 0.0.40
codegen_flags: <defaults>
</compile_context>

<pallas_src>
import jax
import jax.numpy as jnp
from jax.experimental import pallas as pl
from jax.experimental.pallas import tpu as pltpu


def _round_up(x, m):
    return ((x + m - 1) // m) * m


def _vmem_capacity_bytes():
    try:
        return int(pltpu.get_tpu_info().vmem_capacity_bytes)
    except Exception:
        return 64 << 20  # conservative fallback (v7x per-TC VMEM)


def _block_bytes(tm, tn, in_features, rank_pad, x_itemsize, out_itemsize):
    # Double-buffered pipelined blocks + resident weights + h scratch + f32 temps.
    return (2 * tm * in_features * x_itemsize      # x block (2 bufs)
            + 2 * tm * tn * out_itemsize           # out block (2 bufs)
            + 2 * in_features * rank_pad * 2       # w1t bf16 (2 bufs)
            + 2 * rank_pad * tn * 2                # w2t block bf16 (2 bufs)
            + 2 * tn * 4                           # bias block f32 (2 bufs)
            + tm * rank_pad * 2                    # h scratch (bf16)
            + tm * rank_pad * 4                    # f32 result of GEMM 1
            + tm * tn * 4)                         # f32 result of GEMM 2


def _select_tiles(M, in_features, rank_pad, out_features,
                  x_itemsize, out_itemsize, tm=None, tn=None):
    vmem_cap = _vmem_capacity_bytes()
    budget = int(0.60 * vmem_cap)

    # M tile: bf16-friendly multiple of 16, clamped to the problem.
    tm_eff = 512 if tm is None else tm
    tm_eff = max(16, _round_up(tm_eff, 16))
    tm_eff = min(tm_eff, _round_up(M, 16))

    if tn is not None:
        tn_eff = max(128, _round_up(tn, 128))
        tn_eff = min(tn_eff, _round_up(out_features, 128))
    else:
        # Prefer a single lane-dense output tile (second GEMM in one j step).
        tn_eff = _round_up(out_features, 128)
        while (_block_bytes(tm_eff, tn_eff, in_features, rank_pad,
                            x_itemsize, out_itemsize) > budget and tn_eff > 512):
            tn_eff = max(512, _round_up(tn_eff // 2, 128))

    # If still over budget, shrink the M tile.
    while (_block_bytes(tm_eff, tn_eff, in_features, rank_pad,
                        x_itemsize, out_itemsize) > budget and tm_eff > 64):
        tm_eff = max(64, _round_up(tm_eff // 2, 16))

    out_pad = _round_up(out_features, tn_eff)
    blk = _block_bytes(tm_eff, tn_eff, in_features, rank_pad, x_itemsize, out_itemsize)
    vmem_limit = int(min(max(blk + (8 << 20), 32 << 20), int(0.9 * vmem_cap)))
    return tm_eff, tn_eff, out_pad, vmem_limit


def lora_lin_kernel(x_ref, w1t_ref, w2t_ref, b_ref, o_ref, h_ref):
    # x_ref:   (tm, in_features)         input dtype (f32 or bf16)
    # w1t_ref: (in_features, rank_pad)   bf16
    # w2t_ref: (rank_pad, tn)            bf16
    # b_ref:   (1, tn)                   f32
    # o_ref:   (tm, tn)                  out dtype
    # h_ref:   (tm, rank_pad)            bf16 VMEM scratch (cached across j)
    @pl.when(pl.program_id(1) == 0)
    def _():
        # First GEMM computed once per M tile (j == 0); reused for every output
        # tile j.  Avoids out_pad/tn-fold recomputation of x @ w1^T + the cast.
        h = jnp.dot(x_ref[...].astype(jnp.bfloat16), w1t_ref[...],
                    preferred_element_type=jnp.float32)          # (tm, rank_pad) f32
        h_ref[...] = h.astype(jnp.bfloat16)

    y = jnp.dot(h_ref[...], w2t_ref[...],
                preferred_element_type=jnp.float32)              # (tm, tn) f32
    o_ref[...] = (y + b_ref[...]).astype(o_ref.dtype)


def prepare_lora_weights(w1, w2, bias, *, rank_pad, out_pad):
    """One-time weight prep (hoist out of the per-call hot path in real use)."""
    rank, in_features = w1.shape
    out_features = w2.shape[0]
    w1t = jnp.pad(jnp.transpose(w1).astype(jnp.bfloat16),
                  ((0, 0), (0, rank_pad - rank)))                          # (in, rank_pad)
    w2t = jnp.pad(jnp.transpose(w2).astype(jnp.bfloat16),
                  ((0, rank_pad - rank), (0, out_pad - out_features)))     # (rank_pad, out_pad)
    b = jnp.zeros((out_features,), jnp.float32) if bias is None else bias.astype(jnp.float32)
    b2d = jnp.pad(b, (0, out_pad - out_features)).reshape(1, out_pad)
    return w1t, w2t, b2d


def lora_lin_prepared(x2d, w1t, w2t, b2d, *, tm, tn, out_dtype, vmem_limit):
    """Hot path: single pallas_call on prepped (bf16, padded) weights."""
    M, in_features = x2d.shape
    rank_pad = w1t.shape[1]
    out_pad = w2t.shape[1]
    assert out_pad % tn == 0

    grid = (pl.cdiv(M, tm), out_pad // tn)
    return pl.pallas_call(
        lora_lin_kernel,
        out_shape=jax.ShapeDtypeStruct((M, out_pad), out_dtype),
        grid_spec=pltpu.PrefetchScalarGridSpec(
            num_scalar_prefetch=0,
            grid=grid,
            in_specs=[
                pl.BlockSpec((tm, in_features), lambda i, j: (i, 0)),
                pl.BlockSpec((in_features, rank_pad), lambda i, j: (0, 0)),
                pl.BlockSpec((rank_pad, tn), lambda i, j: (0, j)),
                pl.BlockSpec((1, tn), lambda i, j: (0, j)),
            ],
            out_specs=pl.BlockSpec((tm, tn), lambda i, j: (i, j)),
            scratch_shapes=[pltpu.VMEM((tm, rank_pad), jnp.bfloat16)],
        ),
        compiler_params=pltpu.CompilerParams(
            dimension_semantics=("parallel", "arbitrary"),
            vmem_limit_bytes=vmem_limit),
    )(x2d, w1t, w2t, b2d)


def lora_lin(x, w1, w2, bias=None, *, tm=None, tn=None, out_dtype=None):
    """Computes linear2(linear1(x)) with PyTorch-style weights.

    x:    (..., in_features)
    w1:   (rank, in_features)      -- nn.Linear(in_features, rank).weight
    w2:   (out_features, rank)     -- nn.Linear(rank, out_features).weight
    bias: (out_features,) or None  -- nn.Linear(rank, out_features).bias
    returns (..., out_features) in x.dtype (or out_dtype if given)
    """
    *lead, in_features = x.shape
    rank, in_f2 = w1.shape
    out_features, rank2 = w2.shape
    assert in_f2 == in_features and rank2 == rank

    out_dtype = x.dtype if out_dtype is None else out_dtype
    x2d = x.reshape(-1, in_features)
    M = x2d.shape[0]

    rank_pad = _round_up(rank, 128)   # minimum MXU contraction granularity; do not over-pad
    tm_eff, tn_eff, out_pad, vmem_limit = _select_tiles(
        M, in_features, rank_pad, out_features,
        jnp.dtype(x.dtype).itemsize, jnp.dtype(out_dtype).itemsize, tm=tm, tn=tn)

    # NOTE: in a real model this prep runs once where the weights live, not per call.
    w1t, w2t, b2d = prepare_lora_weights(w1, w2, bias, rank_pad=rank_pad, out_pad=out_pad)

    out = lora_lin_prepared(x2d, w1t, w2t, b2d, tm=tm_eff, tn=tn_eff,
                            out_dtype=out_dtype, vmem_limit=vmem_limit)
    out = out[:, :out_features]
    return out.reshape(*lead, out_features)


def lora_lin_ref_f32(x2d, w1, w2, bias):
    # pure-f32 reference matching PyTorch semantics
    b = jnp.zeros((w2.shape[0],), jnp.float32) if bias is None else bias
    return (x2d @ w1.T) @ w2.T + b[None, :]


def lora_lin_ref_bf16(x2d, w1, w2, bias):
    # reference with the same bf16-input / f32-accumulate numerics as the kernel
    xb = x2d.astype(jnp.bfloat16).astype(jnp.float32)
    w1b = w1.astype(jnp.bfloat16).astype(jnp.float32)
    w2b = w2.astype(jnp.bfloat16).astype(jnp.float32)
    b = jnp.zeros((w2.shape[0],), jnp.float32) if bias is None else bias.astype(jnp.float32)
    h = (xb @ w1b.T).astype(jnp.bfloat16).astype(jnp.float32)
    return h @ w2b.T + b[None, :]


if __name__ == "__main__":
    # Small shapes consistent with the module's forward:
    #   in_features=32, rank=8, out_features=200, leading dims (5, 8) -> M=40 rows.
    in_features, rank, out_features = 32, 8, 200
    batch, seq = 5, 8

    key = jax.random.PRNGKey(0)
    kx, k1, k2, kb = jax.random.split(key, 4)

    x = jax.random.normal(kx, (batch, seq, in_features), dtype=jnp.float32)
    w1 = jax.random.normal(k1, (rank, in_features), dtype=jnp.float32) * (1.0 / in_features ** 0.5)
    w2 = jax.random.normal(k2, (out_features, rank), dtype=jnp.float32) * (1.0 / rank ** 0.5)
    bias = jax.random.normal(kb, (out_features,), dtype=jnp.float32) * 0.01

    x2d = x.reshape(-1, in_features)
    ref_bf16 = lora_lin_ref_bf16(x2d, w1, w2, bias).reshape(batch, seq, out_features)
    ref_f32 = lora_lin_ref_f32(x2d, w1, w2, bias).reshape(batch, seq, out_features)

    # Small explicit tiles: exercises a ragged multi-step M grid (40 rows, tm=16)
    # and the h-cache across multiple output tiles (out_pad=256, tn=128 -> 2 j steps).
    out = lora_lin(x, w1, w2, bias, tm=16, tn=128)
    out = jax.block_until_ready(out)
    assert out.shape == (batch, seq, out_features)
    assert jnp.allclose(out, ref_bf16, atol=2e-2, rtol=2e-2), "mismatch vs bf16 reference"
    assert jnp.allclose(out, ref_f32, atol=1e-1, rtol=1e-1), "mismatch vs f32 reference"

    # Auto-tiled path (single lane-dense output tile, VMEM budget from get_tpu_info).
    out_auto = lora_lin(x, w1, w2, bias)
    out_auto = jax.block_until_ready(out_auto)
    assert out_auto.shape == (batch, seq, out_features)
    assert jnp.allclose(out_auto, ref_bf16, atol=2e-2, rtol=2e-2), "mismatch vs bf16 reference (auto tiles)"

    print("KERNEL_OK")
</pallas_src>

<mosaic_0001>
module attributes {stable_mosaic.version = 11 : i64} {
  func.func @lora_lin_kernel(%arg0: i32, %arg1: i32, %arg2: memref<16x32xf32, #tpu.memory_space<vmem>>, %arg3: memref<32x128xbf16, #tpu.memory_space<vmem>>, %arg4: memref<128x128xbf16, #tpu.memory_space<vmem>>, %arg5: memref<1x128xf32, #tpu.memory_space<vmem>>, %arg6: memref<16x128xf32, #tpu.memory_space<vmem>>, %arg7: memref<16x128xbf16, #tpu.memory_space<vmem>>) attributes {dimension_semantics = [#tpu.dimension_semantics<parallel>, #tpu.dimension_semantics<arbitrary>], iteration_bounds = array<i64: 3, 2>, scalar_prefetch = 0 : i64, scratch_operands = 1 : i64, tpu.core_type = #tpu.core_type<tc>, window_params = [{transform_indices = @transform_0, window_bounds = array<i64: 16, 32>}, {pipeline_mode = #tpu.pipeline_mode<synchronous>, transform_indices = @transform_1, window_bounds = array<i64: 32, 128>}, {transform_indices = @transform_2, window_bounds = array<i64: 128, 128>}, {transform_indices = @transform_3, window_bounds = array<i64: 1, 128>}, {transform_indices = @transform_4, window_bounds = array<i64: 16, 128>}]} {
    %c0_i32 = arith.constant 0 : i32
    %0 = arith.cmpi eq, %arg1, %c0_i32 : i32
    %1 = arith.extui %0 : i1 to i32
    %c0_i32_0 = arith.constant 0 : i32
    %2 = arith.cmpi ne, %1, %c0_i32_0 : i32
    scf.if %2 {
      %c0_8 = arith.constant 0 : index
      %c0_9 = arith.constant 0 : index
      %10 = vector.load %arg2[%c0_8, %c0_9] : memref<16x32xf32, #tpu.memory_space<vmem>>, vector<16x32xf32>
      %11 = arith.truncf %10 : vector<16x32xf32> to vector<16x32xbf16>
      %c0_10 = arith.constant 0 : index
      %c0_11 = arith.constant 0 : index
      %12 = vector.load %arg3[%c0_10, %c0_11] : memref<32x128xbf16, #tpu.memory_space<vmem>>, vector<32x128xbf16>
      %cst_12 = arith.constant dense<0.000000e+00> : vector<16x128xf32>
      %13 = tpu.matmul %11, %12, %cst_12 {dimension_numbers = #tpu.dot_dimension_numbers<[1], [0], [0], [1], [0, 0, 1, 1], [], []>} : vector<16x32xbf16>, vector<32x128xbf16>, vector<16x128xf32> -> vector<16x128xf32>
      %14 = arith.truncf %13 : vector<16x128xf32> to vector<16x128xbf16>
      %c0_13 = arith.constant 0 : index
      %c0_14 = arith.constant 0 : index
      %15 = vector.load %arg7[%c0_13, %c0_14] : memref<16x128xbf16, #tpu.memory_space<vmem>>, vector<16x128xbf16>
      tpu.vector_store %arg7[%c0_13, %c0_14], %14 {strides = array<i32>} : memref<16x128xbf16, #tpu.memory_space<vmem>>, vector<16x128xbf16>,
    } else {
    }
    %c0 = arith.constant 0 : index
    %c0_1 = arith.constant 0 : index
    %3 = vector.load %arg7[%c0, %c0_1] : memref<16x128xbf16, #tpu.memory_space<vmem>>, vector<16x128xbf16>
    %c0_2 = arith.constant 0 : index
    %c0_3 = arith.constant 0 : index
    %4 = vector.load %arg4[%c0_2, %c0_3] : memref<128x128xbf16, #tpu.memory_space<vmem>>, vector<128x128xbf16>
    %cst = arith.constant dense<0.000000e+00> : vector<16x128xf32>
    %5 = tpu.matmul %3, %4, %cst {dimension_numbers = #tpu.dot_dimension_numbers<[1], [0], [0], [1], [0, 0, 1, 1], [], []>} : vector<16x128xbf16>, vector<128x128xbf16>, vector<16x128xf32> -> vector<16x128xf32>
    %c0_4 = arith.constant 0 : index
    %c0_5 = arith.constant 0 : index
    %6 = vector.load %arg5[%c0_4, %c0_5] : memref<1x128xf32, #tpu.memory_space<vmem>>, vector<1x128xf32>
    %7 = vector.broadcast %6 : vector<1x128xf32> to vector<16x128xf32>
    %8 = arith.addf %5, %7 : vector<16x128xf32>
    %c0_6 = arith.constant 0 : index
    %c0_7 = arith.constant 0 : index
    %9 = vector.load %arg6[%c0_6, %c0_7] : memref<16x128xf32, #tpu.memory_space<vmem>>, vector<16x128xf32>
    tpu.vector_store %arg6[%c0_6, %c0_7], %8 {strides = array<i32>} : memref<16x128xf32, #tpu.memory_space<vmem>>, vector<16x128xf32>,
    return
  }
  func.func @transform_0(%arg0: i32, %arg1: i32) -> (i32, i32) {
    %c0_i32 = arith.constant 0 : i32
    %c0_i32_0 = arith.constant 0 : i32
    return %arg0, %c0_i32 : i32, i32
  }
  func.func @transform_1(%arg0: i32, %arg1: i32) -> (i32, i32) {
    %c0_i32 = arith.constant 0 : i32
    %c0_i32_0 = arith.constant 0 : i32
    %c0_i32_1 = arith.constant 0 : i32
    return %c0_i32, %c0_i32_0 : i32, i32
  }
  func.func @transform_2(%arg0: i32, %arg1: i32) -> (i32, i32) {
    %c0_i32 = arith.constant 0 : i32
    %c0_i32_0 = arith.constant 0 : i32
    return %c0_i32, %arg1 : i32, i32
  }
  func.func @transform_3(%arg0: i32, %arg1: i32) -> (i32, i32) {
    %c0_i32 = arith.constant 0 : i32
    %c0_i32_0 = arith.constant 0 : i32
    return %c0_i32, %arg1 : i32, i32
  }
  func.func @transform_4(%arg0: i32, %arg1: i32) -> (i32, i32) {
    %c0_i32 = arith.constant 0 : i32
    return %arg0, %arg1 : i32, i32
  }
}

</mosaic_0001>

<llo_original>
// kernel: tpu_custom_call.1
$region0: #{tpu_custom_call.1}
  #allocation0 [shape = 'u32[]', space=smem, size = 0x4, offset = 0x4, fixed_abs, tag = 'smem constant byte address 0x4 - core index']
  #allocation1 [shape = 'u32[144,128]{1,0:T(1,128)}', space=vmem, size = 0x12000, scoped, tag = 'internal scratch']
  #allocation2 [shape = 'bf16[16,128]{1,0:T(16,128)(2,1)}', space=vmem, size = 0x1000, scoped, tag = 'scratch operand']
  %s0 = inlined_call_operand.vmem [shape: f32[40,32], index: 0, kind: input, shape index: {}]
  %s1 = inlined_call_operand.vmem [shape: bf16[32,128], index: 1, kind: input, shape index: {}]
  %s2 = inlined_call_operand.hbm [shape: bf16[128,256], index: 2, kind: input, shape index: {}]
  %s3 = inlined_call_operand.vmem [shape: f32[1,256], index: 3, kind: input, shape index: {}]
  %s4 = inlined_call_operand.hbm [shape: f32[40,256], index: 4, kind: output, shape index: {}]
  %s5 = sld [smem:[#allocation0]]
  $region57: #{tpu_custom_call.1} parent=0
    _
  %s7 = ssub.s32 1, %s5
  %s8 = scalar_select 0, %s7, %s5
  $region1: #{tpu_custom_call.1} parent=0
    #allocation3 [shape = 'u8[65536]{0}', space=vmem, size = 0x10000, scoped, tag = 'input window, operand 2']
    #allocation4 [shape = 's32[2]{0}', space=sflag, size = 0x8, scoped, tag = 'scoped memory for tpu_custom_call.1']
    #allocation5 [shape = 's32[2]{0}', space=sflag, size = 0x8, scoped, tag = 'scoped memory for tpu_custom_call.1']
    #allocation6 [shape = 'u8[16384]{0}', space=vmem, size = 0x4000, scoped, tag = 'output window, operand 0']
    %9 = vsyncpa [#allocation4], 0
    %s10 = scalar_lea.sflag [#allocation4], 1
    %11 = vsyncpa %s10, 0
    %12 = vsyncpa [#allocation5], 0
    %s13 = scalar_lea.sflag [#allocation5], 1
    %14 = vsyncpa %s13, 0
    loop: start=0, step=1, limit=8
    $region2: #{tpu_custom_call.1} parent=1 // loop_pre_header
      _
    $region3: #{tpu_custom_call.1} parent=1 // loop_header
      %s16 = sphi 0, %s20
      %p17 = scmp.ge.s32.totalorder %s16, 8
      %s23 = sphi 0, %s35
      %s24 = sphi 0, %s31
      %s25 = sphi 0, %s23
      %s26 = sphi 0, %s24
      %s27 = sphi 0, %s25
      %s28 = sphi 0, %s26
      %s38 = sphi 0, %s40
      %s41 = sphi 0, %s38
      %s42 = sphi 0, %s41
      %s58 = sphi 0, %s42
      %s62 = sphi 0, %s62
      %s64 = sphi 0, %s62
      %s65 = sphi 0, %s64
      %s79 = sphi 0, %s65
      %s85 = sphi 0, %s87
      %s88 = sphi 0, %s85
      %s89 = sphi 0, %s88
      %s105 = sphi 0, %s89
      %s111 = sphi 0, %s113
      %s114 = sphi 0, %s111
      %s115 = sphi 0, %s114
      %s131 = sphi 0, %s115
      %s139 = sphi 0, %s141
      %s142 = sphi 0, %s139
      %s143 = sphi 0, %s142
      %s159 = sphi 0, %s143
    $region4: #{tpu_custom_call.1} parent=1 // loop_header_branch
      %19 = sbr.rel (%p17) target = $region8
    $region5: #{tpu_custom_call.1} parent=1 // loop_body
      %s21 = ssub.s32 %s16, 1
      %s22 = ssub.s32 %s16, 2
      %s29 = sadd.s32 1, %s24
      %p30 = scmp.ge.s32.totalorder %s29, 2
      %s31 = scalar_select %p30, 0, %s29
      %s32 = sadd.s32 1, %s23
      %s33 = scalar_select %p30, %s32, %s23
      %p34 = scmp.ge.s32.totalorder %s33, 3
      %s35 = scalar_select %p34, 0, %s33
      %s36 = ssub.s32 %s23, %s35
      %p37 = scmp.eq.s32.totalorder %s36, 0
      %s39 = sadd.s32 %s38, 1
      %s40 = scalar_select %p37, %s38, %s39
      %p43 = pneg %p37
      %p44 = scmp.eq.s32.totalorder %s16, 5
      %p45 = por %p43, %p44
      %p46 = scmp.ne.s32.totalorder %s38, %s41
      %p47 = scmp.eq.s32.totalorder %s16, 0
      %p48 = por %p46, %p47
      %p49 = scmp.ne.s32.totalorder %s38, %s41
      %p50 = scmp.eq.s32.totalorder %s21, 5
      %p51 = por %p49, %p50
      %p52 = scmp.ne.s32.totalorder %s41, %s42
      %p53 = scmp.eq.s32.totalorder %s21, 0
      %p54 = por %p52, %p53
      %p55 = scmp.ne.s32.totalorder %s41, %s42
      %p56 = scmp.eq.s32.totalorder %s22, 5
      %p57 = por %p55, %p56
      %p59 = scmp.ne.s32.totalorder %s42, %s58
      %p60 = scmp.eq.s32.totalorder %s22, 0
      %p61 = por %p59, %p60
      %s63 = sadd.s32 %s62, 1
      %p66 = scmp.eq.s32.totalorder %s16, 5
      %p67 = scmp.ne.s32.totalorder %s62, %s64
      %p68 = scmp.eq.s32.totalorder %s16, 0
      %p69 = por %p67, %p68
      %p70 = scmp.ne.s32.totalorder %s62, %s64
      %p71 = scmp.eq.s32.totalorder %s21, 5
      %p72 = por %p70, %p71
      %p73 = scmp.ne.s32.totalorder %s64, %s65
      %p74 = scmp.eq.s32.totalorder %s21, 0
      %p75 = por %p73, %p74
      %p76 = scmp.ne.s32.totalorder %s64, %s65
      %p77 = scmp.eq.s32.totalorder %s22, 5
      %p78 = por %p76, %p77
      %p80 = scmp.ne.s32.totalorder %s65, %s79
      %p81 = scmp.eq.s32.totalorder %s22, 0
      %p82 = por %p80, %p81
      %s83 = ssub.s32 %s24, %s31
      %p84 = scmp.eq.s32.totalorder %s83, 0
      %s86 = sadd.s32 %s85, 1
      %s87 = scalar_select %p84, %s85, %s86
      %p90 = pneg %p84
      %p91 = scmp.eq.s32.totalorder %s16, 5
      %p92 = por %p90, %p91
      %p93 = scmp.ne.s32.totalorder %s85, %s88
      %p94 = scmp.eq.s32.totalorder %s16, 0
      %p95 = por %p93, %p94
      %p96 = scmp.ne.s32.totalorder %s85, %s88
      %p97 = scmp.eq.s32.totalorder %s21, 5
      %p98 = por %p96, %p97
      %p99 = scmp.ne.s32.totalorder %s88, %s89
      %p100 = scmp.eq.s32.totalorder %s21, 0
      %p101 = por %p99, %p100
      %p102 = scmp.ne.s32.totalorder %s88, %s89
      %p103 = scmp.eq.s32.totalorder %s22, 5
      %p104 = por %p102, %p103
      %p106 = scmp.ne.s32.totalorder %s89, %s105
      %p107 = scmp.eq.s32.totalorder %s22, 0
      %p108 = por %p106, %p107
      %s109 = ssub.s32 %s24, %s31
      %p110 = scmp.eq.s32.totalorder %s109, 0
      %s112 = sadd.s32 %s111, 1
      %s113 = scalar_select %p110, %s111, %s112
      %p116 = pneg %p110
      %p117 = scmp.eq.s32.totalorder %s16, 5
      %p118 = por %p116, %p117
      %p119 = scmp.ne.s32.totalorder %s111, %s114
      %p120 = scmp.eq.s32.totalorder %s16, 0
      %p121 = por %p119, %p120
      %p122 = scmp.ne.s32.totalorder %s111, %s114
      %p123 = scmp.eq.s32.totalorder %s21, 5
      %p124 = por %p122, %p123
      %p125 = scmp.ne.s32.totalorder %s114, %s115
      %p126 = scmp.eq.s32.totalorder %s21, 0
      %p127 = por %p125, %p126
      %p128 = scmp.ne.s32.totalorder %s114, %s115
      %p129 = scmp.eq.s32.totalorder %s22, 5
      %p130 = por %p128, %p129
      %p132 = scmp.ne.s32.totalorder %s115, %s131
      %p133 = scmp.eq.s32.totalorder %s22, 0
      %p134 = por %p132, %p133
      %s135 = ssub.s32 %s23, %s35
      %s136 = ssub.s32 %s24, %s31
      %s137 = sor.u32 %s135, %s136
      %p138 = scmp.eq.s32.totalorder %s137, 0
      %s140 = sadd.s32 %s139, 1
      %s141 = scalar_select %p138, %s139, %s140
      %p144 = pneg %p138
      %p145 = scmp.eq.s32.totalorder %s16, 5
      %p146 = por %p144, %p145
      %p147 = scmp.ne.s32.totalorder %s139, %s142
      %p148 = scmp.eq.s32.totalorder %s16, 0
      %p149 = por %p147, %p148
      %p150 = scmp.ne.s32.totalorder %s139, %s142
      %p151 = scmp.eq.s32.totalorder %s21, 5
      %p152 = por %p150, %p151
      %p153 = scmp.ne.s32.totalorder %s142, %s143
      %p154 = scmp.eq.s32.totalorder %s21, 0
      %p155 = por %p153, %p154
      %p156 = scmp.ne.s32.totalorder %s142, %s143
      %p157 = scmp.eq.s32.totalorder %s22, 5
      %p158 = por %p156, %p157
      %p160 = scmp.ne.s32.totalorder %s143, %s159
      %p161 = scmp.eq.s32.totalorder %s22, 0
      %p162 = por %p160, %p161
      %p163 = scmp.le.s32.totalorder 1, %s16
      %p164 = scmp.lt.s32.totalorder %s16, 7
      %p165 = pnand %p163, %p164
      %p166 = pneg %p165
      // Predicated region
      $region9: #{tpu_custom_call.1} parent=5 // pred_check
        _
      $region10: #{tpu_custom_call.1} parent=5 // pred_check_branch
        %168 = sbr.rel (%p165) target = $region12
      $region11: #{tpu_custom_call.1} parent=5 // pred_region
        %s169 = ssub.s32 %s16, 1
        // Predicated region
        $region13: #{tpu_custom_call.1} parent=11 // pred_check
          %p170 = pneg %p75
        $region14: #{tpu_custom_call.1} parent=11 // pred_check_branch
          %172 = sbr.rel (%p170) target = $region16
        $region15: #{tpu_custom_call.1} parent=11 // pred_region
          _
        $region16: #{tpu_custom_call.1} parent=11 // pred_fallthru
          _
      $region12: #{tpu_custom_call.1} parent=5 // pred_fallthru
        _
      %p173 = scmp.lt.s32.totalorder %s16, 6
      // Predicated region
      $region17: #{tpu_custom_call.1} parent=5 // pred_check
        %p174 = pneg %p173
      $region18: #{tpu_custom_call.1} parent=5 // pred_check_branch
        %176 = sbr.rel (%p174) target = $region20
      $region19: #{tpu_custom_call.1} parent=5 // pred_region
        // Predicated region
        $region21: #{tpu_custom_call.1} parent=19 // pred_check
          %p177 = pneg %p48
        $region22: #{tpu_custom_call.1} parent=19 // pred_check_branch
          %179 = sbr.rel (%p177) target = $region24
        $region23: #{tpu_custom_call.1} parent=19 // pred_region
          %s180 = smul.u32 2, %s23
          %s181 = ssub.s32 5, %s180
          %p182 = scmp.lt.s32.totalorder %s181, 2
          %s183 = scalar_select %p182, %s181, 2
          %s184 = smul.u32 128, %s183
          %p185 = scmp.lt.s32.totalorder %s180, 4
          %s186 = scalar_select %p185, %s180, 4
          %s187 = smul.addr %s186, 8
          %s188 = scalar_lea.vmem %s0, %s187
          %s189 = smul.u32 2, %s23
          %s190 = ssub.s32 5, %s189
          %p191 = scmp.lt.s32.totalorder %s190, 2
          %s192 = scalar_select %p191, %s190, 2
          %s193 = smul.u32 128, %s192
        $region24: #{tpu_custom_call.1} parent=19 // pred_fallthru
          _
        // Predicated region
        $region25: #{tpu_custom_call.1} parent=19 // pred_check
          %p194 = pneg %p95
        $region26: #{tpu_custom_call.1} parent=19 // pred_check_branch
          %196 = sbr.rel (%p194) target = $region28
        $region27: #{tpu_custom_call.1} parent=19 // pred_region
          %s197 = sand.u32 %s85, 1
          %s198 = scalar_lea.sflag [#allocation4], %s197
          %s199 = sand.u32 %s85, 1
          %s200 = smul.addr %s199, 64
          %s201 = scalar_lea.vmem [#allocation3], %s200
          %s203 = ssub.s32 1024, 1024
          %204 = vsyncadd %s198, %s203
          %s205 = smul.addr %s24, 64
          %s206 = scalar_lea.hbm %s2, %s205
          %s207 = sshll.u32 %s201, 4
          %s208 = int_to_ptr.vmem [resolvable:$true] %s207
          %213 = dma.hbm_to_vmem [thread:$0]  %s206, 1024, %s208, %s198, 128, 64, 4
        $region28: #{tpu_custom_call.1} parent=19 // pred_fallthru
          _
        // Predicated region
        $region29: #{tpu_custom_call.1} parent=19 // pred_check
          %p214 = pneg %p121
        $region30: #{tpu_custom_call.1} parent=19 // pred_check_branch
          %216 = sbr.rel (%p214) target = $region32
        $region31: #{tpu_custom_call.1} parent=19 // pred_region
          %p217 = scmp.lt.s32.totalorder %s24, 1
          %s218 = scalar_select %p217, %s24, 1
          %s219 = scalar_lea.vmem %s3, %s218
        $region32: #{tpu_custom_call.1} parent=19 // pred_fallthru
          _
      $region20: #{tpu_custom_call.1} parent=5 // pred_fallthru
        _
      %p220 = scmp.le.s32.totalorder 1, %s16
      %p221 = scmp.lt.s32.totalorder %s16, 7
      %p222 = pnand %p220, %p221
      %p223 = pneg %p222
      // Predicated region
      $region33: #{tpu_custom_call.1} parent=5 // pred_check
        _
      $region34: #{tpu_custom_call.1} parent=5 // pred_check_branch
        %225 = sbr.rel (%p222) target = $region36
      $region35: #{tpu_custom_call.1} parent=5 // pred_region
        %s226 = ssub.s32 %s16, 1
        %s227 = sand.u32 %s88, 1
        %s228 = scalar_lea.sflag [#allocation4], %s227
        %s229 = sand.u32 %s88, 1
        %s230 = smul.addr %s229, 64
        %s231 = scalar_lea.vmem [#allocation3], %s230
        // Predicated region
        $region37: #{tpu_custom_call.1} parent=35 // pred_check
          %p232 = pneg %p101
        $region38: #{tpu_custom_call.1} parent=35 // pred_check_branch
          %234 = sbr.rel (%p232) target = $region40
        $region39: #{tpu_custom_call.1} parent=35 // pred_region
          %235 = dma.done %s228, 1024
        $region40: #{tpu_custom_call.1} parent=35 // pred_fallthru
          _
        %s236 = smul.u32 2, %s25
        %s237 = ssub.s32 5, %s236
        %p238 = scmp.lt.s32.totalorder %s237, 2
        %s239 = scalar_select %p238, %s237, 2
        %s240 = smul.u32 128, %s239
        %p241 = scmp.lt.s32.totalorder %s236, 4
        %s242 = scalar_select %p241, %s236, 4
        %s243 = smul.addr %s242, 8
        %s244 = scalar_lea.vmem %s0, %s243
        %p245 = pneg %p54
        %p246 = pneg %p51
        %p247 = pneg %p75
        %p248 = pneg %p72
        %s249 = sand.u32 %s88, 1
        %s250 = scalar_lea.sflag [#allocation4], %s249
        %s251 = sand.u32 %s88, 1
        %s252 = smul.addr %s251, 64
        %s253 = scalar_lea.vmem [#allocation3], %s252
        %p254 = pneg %p101
        %p255 = pneg %p98
        %p256 = scmp.lt.s32.totalorder %s26, 1
        %s257 = scalar_select %p256, %s26, 1
        %s258 = scalar_lea.vmem %s3, %s257
        %p259 = pneg %p127
        %p260 = pneg %p124
        %p261 = pneg %p155
        %p262 = pneg %p152
        %s263 = sand.u32 %s142, 1
        %s264 = scalar_lea.sflag [#allocation5], %s263
        %s265 = sand.u32 %s142, 1
        %s266 = smul.addr %s265, 16
        %s267 = scalar_lea.vmem [#allocation6], %s266
        %s268 = smul.u32 2, %s25
        %s269 = ssub.s32 5, %s268
        %p270 = scmp.lt.s32.totalorder %s269, 2
        %s271 = scalar_select %p270, %s269, 2
        %s272 = smul.u32 128, %s271
        %p273 = scmp.lt.s32.totalorder %s268, 4
        %s274 = scalar_select %p273, %s268, 4
        %s275 = smul.addr %s274, 8
        %s276 = scalar_lea.vmem %s0, %s275
        %s277 = smul.u32 2, %s25
        %s278 = ssub.s32 5, %s277
        %p279 = scmp.lt.s32.totalorder %s278, 2
        %s280 = scalar_select %p279, %s278, 2
        %s281 = smul.u32 128, %s280
        %p282 = scmp.lt.s32.totalorder %s26, 1
        %s283 = scalar_select %p282, %s26, 1
        %s284 = scalar_lea.vmem %s3, %s283
        %s285 = smul.u32 2, %s25
        %s286 = ssub.s32 5, %s285
        %p287 = scmp.lt.s32.totalorder %s286, 2
        %s288 = scalar_select %p287, %s286, 2
        %s289 = smul.u32 128, %s288
        %p291 = scmp.eq.s32.totalorder %s26, 0
        // Predicated region
        $region41: #{tpu_custom_call.1} parent=35 // pred_check
          %p292 = pneg %p291
        $region42: #{tpu_custom_call.1} parent=35 // pred_check_branch
          %294 = sbr.rel (%p292) target = $region44
        $region43: #{tpu_custom_call.1} parent=35 // pred_region
          %v295 = vld [vmem:[%s276] sm:$0xff]
          %v296 = vld [vmem:[%s276 + $0x8] sm:$0xff]
          %v297 = vpack.c.bf16 %v296, %v295
          %v298 = vld [vmem:[%s1] sm:$0xf]
          %v299 = vld [vmem:[%s1 + $0x4] sm:$0xf]
          %v300 = vld [vmem:[%s1 + $0x8] sm:$0xf]
          %v301 = vld [vmem:[%s1 + $0xc] sm:$0xf]
          %v306 = vunpack.c.l.b16 %v298
          %v307 = vunpack.c.l.b16 %v299
          %v308 = vunpack.c.l.b16 %v300
          %v309 = vunpack.c.l.b16 %v301
          %v310 = vpack.c.b16 %v307, %v306
          %v311 = vpack.c.b16 %v309, %v308
          %vm314 = vcmask 261120
          %v316 = vsel %vm314, %v297, 0
          %318 = vmatprep.subr.bf16.mxu0 0
          %319 = vmatpush1.bf16.msra.mxu0 %v310
          %320 = vmatprep.subr.bf16.mxu0 0
          %321 = vmatpush1.bf16.msra.mxu0 %v311
          %322 = vmatprep.subr.bf16.mxu0 0
          %323 = vmatpush1.bf16.msra.mxu0 0
          %324 = vmatprep.subr.bf16.mxu0 0
          %325 = vmatpush1.bf16.msra.mxu0 0
          %326 = vmatprep.subr.bf16.mxu0 0
          %327 = vmatpush1.bf16.msra.mxu0 0
          %328 = vmatprep.subr.bf16.mxu0 0
          %329 = vmatpush1.bf16.msra.mxu0 0
          %330 = vmatprep.subr.bf16.mxu0 0
          %331 = vmatpush1.bf16.msra.mxu0 0
          %332 = vmatprep.subr.bf16.mxu0 0
          %333 = vmatpush1.bf16.msra.mxu0 0
          %334 = vmatprep.subr.bf16.mxu0 0
          %335 = vmatpush1.bf16.msra.mxu0 0
          %336 = vmatprep.subr.bf16.mxu0 0
          %337 = vmatpush1.bf16.msra.mxu0 0
          %338 = vmatprep.subr.bf16.mxu0 0
          %339 = vmatpush1.bf16.msra.mxu0 0
          %340 = vmatprep.subr.bf16.mxu0 0
          %341 = vmatpush1.bf16.msra.mxu0 0
          %342 = vmatprep.subr.bf16.mxu0 0
          %343 = vmatpush1.bf16.msra.mxu0 0
          %344 = vmatprep.subr.bf16.mxu0 0
          %345 = vmatpush1.bf16.msra.mxu0 0
          %346 = vmatprep.subr.bf16.mxu0 0
          %347 = vmatpush1.bf16.msra.mxu0 0
          %348 = vmatprep.subr.bf16.mxu0 0
          %349 = vmatpush1.bf16.msra.mxu0 0
          %350 = vmatprep.mubr.bf16.mxu0 0
          %351 = vmatmul.mubr.bf16.gmra.mrb[0].mxu0 %v316
          %v352 = vpop.f32.mrb[0].mxu0
          %v353 = vadd.f32 0.0, %v352
          %v354 = vpop.f32.mrb[0].mxu0
          %v355 = vpop.f32.mrb[0].mxu0
          %v356 = vadd.f32 0.0, %v355
          %v357 = vpop.f32.mrb[0].mxu0
          %358 = vdwg.mxu0
          %v359 = vpack.c.bf16 %v356, %v353
          %360 = vst [vmem:[#allocation2] sm:$0xff] %v359
        $region44: #{tpu_custom_call.1} parent=35 // pred_fallthru
          _
        %v361 = vld [vmem:[#allocation2] sm:$0xff]
        %v362 = vld [vmem:[%s231] sm:$0xf]
        %v363 = vld [vmem:[%s231 + $0x4] sm:$0xf]
        %v364 = vld [vmem:[%s231 + $0x8] sm:$0xf]
        %v365 = vld [vmem:[%s231 + $0xc] sm:$0xf]
        %v366 = vld [vmem:[%s231 + $0x10] sm:$0xf]
        %v367 = vld [vmem:[%s231 + $0x14] sm:$0xf]
        %v368 = vld [vmem:[%s231 + $0x18] sm:$0xf]
        %v369 = vld [vmem:[%s231 + $0x1c] sm:$0xf]
        %v370 = vld [vmem:[%s231 + $0x20] sm:$0xf]
        %v371 = vld [vmem:[%s231 + $0x24] sm:$0xf]
        %v372 = vld [vmem:[%s231 + $0x28] sm:$0xf]
        %v373 = vld [vmem:[%s231 + $0x2c] sm:$0xf]
        %v374 = vld [vmem:[%s231 + $0x30] sm:$0xf]
        %v375 = vld [vmem:[%s231 + $0x34] sm:$0xf]
        %v376 = vld [vmem:[%s231 + $0x38] sm:$0xf]
        %v377 = vld [vmem:[%s231 + $0x3c] sm:$0xf]
        %v378 = vld [vmem:[%s284] sm:$0x1]
        %v380 = vlaneseq
        %v381 = vshrl.u32 %v380, 7
        %v382 = vsub.s32 0, %v381
        %v383 = vrot.slane %v378, %v382
        %v401 = vunpack.c.l.b16 %v362
        %v402 = vunpack.c.l.b16 %v363
        %v403 = vunpack.c.l.b16 %v364
        %v404 = vunpack.c.l.b16 %v365
        %v405 = vunpack.c.l.b16 %v366
        %v406 = vunpack.c.l.b16 %v367
        %v407 = vunpack.c.l.b16 %v368
        %v408 = vunpack.c.l.b16 %v369
        %v409 = vunpack.c.l.b16 %v370
        %v410 = vunpack.c.l.b16 %v371
        %v411 = vunpack.c.l.b16 %v372
        %v412 = vunpack.c.l.b16 %v373
        %v413 = vunpack.c.l.b16 %v374
        %v414 = vunpack.c.l.b16 %v375
        %v415 = vunpack.c.l.b16 %v376
        %v416 = vunpack.c.l.b16 %v377
        %v417 = vpack.c.b16 %v402, %v401
        %v418 = vpack.c.b16 %v404, %v403
        %v419 = vpack.c.b16 %v406, %v405
        %v420 = vpack.c.b16 %v408, %v407
        %v421 = vpack.c.b16 %v410, %v409
        %v422 = vpack.c.b16 %v412, %v411
        %v423 = vpack.c.b16 %v414, %v413
        %v424 = vpack.c.b16 %v416, %v415
        %433 = vmatprep.subr.bf16.mxu0 0
        %434 = vmatpush1.bf16.msra.mxu0 %v417
        %435 = vmatprep.subr.bf16.mxu0 0
        %436 = vmatpush1.bf16.msra.mxu0 %v418
        %437 = vmatprep.subr.bf16.mxu0 0
        %438 = vmatpush1.bf16.msra.mxu0 %v419
        %439 = vmatprep.subr.bf16.mxu0 0
        %440 = vmatpush1.bf16.msra.mxu0 %v420
        %441 = vmatprep.subr.bf16.mxu0 0
        %442 = vmatpush1.bf16.msra.mxu0 %v421
        %443 = vmatprep.subr.bf16.mxu0 0
        %444 = vmatpush1.bf16.msra.mxu0 %v422
        %445 = vmatprep.subr.bf16.mxu0 0
        %446 = vmatpush1.bf16.msra.mxu0 %v423
        %447 = vmatprep.subr.bf16.mxu0 0
        %448 = vmatpush1.bf16.msra.mxu0 %v424
        %449 = vmatprep.subr.bf16.mxu0 0
        %450 = vmatpush1.bf16.msra.mxu0 0
        %451 = vmatprep.subr.bf16.mxu0 0
        %452 = vmatpush1.bf16.msra.mxu0 0
        %453 = vmatprep.subr.bf16.mxu0 0
        %454 = vmatpush1.bf16.msra.mxu0 0
        %455 = vmatprep.subr.bf16.mxu0 0
        %456 = vmatpush1.bf16.msra.mxu0 0
        %457 = vmatprep.subr.bf16.mxu0 0
        %458 = vmatpush1.bf16.msra.mxu0 0
        %459 = vmatprep.subr.bf16.mxu0 0
        %460 = vmatpush1.bf16.msra.mxu0 0
        %461 = vmatprep.subr.bf16.mxu0 0
        %462 = vmatpush1.bf16.msra.mxu0 0
        %463 = vmatprep.subr.bf16.mxu0 0
        %464 = vmatpush1.bf16.msra.mxu0 0
        %465 = vmatprep.mubr.bf16.mxu0 0
        %466 = vmatmul.mubr.bf16.gmra.mrb[0].mxu0 %v361
        %v467 = vpop.f32.mrb[0].mxu0
        %v468 = vadd.f32 %v383, %v467
        %v469 = vpop.f32.mrb[0].mxu0
        %v470 = vpop.f32.mrb[0].mxu0
        %v471 = vadd.f32 %v383, %v470
        %v472 = vpop.f32.mrb[0].mxu0
        %473 = vdwg.mxu0
        %474 = vst [vmem:[%s267] sm:$0xff] %v468
        %475 = vst [vmem:[%s267 + $0x8] sm:$0xff] %v471
        %s476 = sand.u32 %s142, 1
        %s477 = scalar_lea.sflag [#allocation5], %s476
        %s478 = sand.u32 %s142, 1
        %s479 = smul.addr %s478, 16
        %s480 = scalar_lea.vmem [#allocation6], %s479
        // Predicated region
        $region45: #{tpu_custom_call.1} parent=35 // pred_check
          %p481 = pneg %p152
        $region46: #{tpu_custom_call.1} parent=35 // pred_check_branch
          %483 = sbr.rel (%p481) target = $region48
        $region47: #{tpu_custom_call.1} parent=35 // pred_region
          %s484 = smul.u32 2, %s25
          %s485 = ssub.s32 5, %s484
          %p486 = scmp.lt.s32.totalorder %s485, 2
          %s487 = scalar_select %p486, %s485, 2
          %s488 = smul.u32 128, %s487
          %s490 = ssub.s32 256, %s488
          %491 = vsyncadd %s477, %s490
          %p492 = scmp.ne.s32.totalorder 0, %s488
          %s493 = smul.addr %s484, 2
          %s494 = sadd.s32 %s26, %s493
          %s495 = smul.addr %s494, 128
          %s496 = scalar_lea.hbm %s4, %s495
          %s497 = smul.u32 8, %s487
          %s498 = sshll.u32 %s480, 4
          %s499 = int_to_ptr.vmem [resolvable:$true] %s498
          %s500 = sshll.u32 %s497, 4
          %504 = dma.vmem_to_hbm [thread:$0]  (%p492), %s499, %s500, %s496, %s477, 128, 256, 8
        $region48: #{tpu_custom_call.1} parent=35 // pred_fallthru
          _
      $region36: #{tpu_custom_call.1} parent=5 // pred_fallthru
        _
      %p505 = scmp.le.s32.totalorder 2, %s16
      // Predicated region
      $region49: #{tpu_custom_call.1} parent=5 // pred_check
        %p506 = pneg %p505
      $region50: #{tpu_custom_call.1} parent=5 // pred_check_branch
        %508 = sbr.rel (%p506) target = $region52
      $region51: #{tpu_custom_call.1} parent=5 // pred_region
        %s509 = ssub.s32 %s16, 2
        // Predicated region
        $region53: #{tpu_custom_call.1} parent=51 // pred_check
          %p510 = pneg %p158
        $region54: #{tpu_custom_call.1} parent=51 // pred_check_branch
          %512 = sbr.rel (%p510) target = $region56
        $region55: #{tpu_custom_call.1} parent=51 // pred_region
          %s513 = sand.u32 %s143, 1
          %s514 = scalar_lea.sflag [#allocation5], %s513
          %s515 = sand.u32 %s143, 1
          %s516 = smul.addr %s515, 16
          %s517 = scalar_lea.vmem [#allocation6], %s516
          %518 = dma.done %s514, 256
        $region56: #{tpu_custom_call.1} parent=51 // pred_fallthru
          _
      $region52: #{tpu_custom_call.1} parent=5 // pred_fallthru
        _
    $region6: #{tpu_custom_call.1} parent=1 // loop_footer
      %s20 = sadd.s32 1, %s16
    $region7: #{tpu_custom_call.1} parent=1 // loop_footer_branch
      %15 = sbr.rel target = $region3
    $region8: #{tpu_custom_call.1} parent=1 // loop_exit
      _
    %519 = vsyncpa [#allocation4], 1
    %s520 = scalar_lea.sflag [#allocation4], 1
    %521 = vsyncpa %s520, 1
    %522 = vsyncpa [#allocation5], 1
    %s523 = scalar_lea.sflag [#allocation5], 1
    %524 = vsyncpa %s523, 1

</llo_original>
